<compile_context>
chip_gen: v6e
topology: v6e:2x2x1
jax: 0.10.0
libtpu: 0.0.40
codegen_flags: <defaults>
</compile_context>

<pallas_src>
import jax
import jax.numpy as jnp
from jax import lax
from jax.experimental import pallas as pl
from jax.experimental.pallas import tpu as pltpu

BN_EPS = 1e-5


def _feat_bottleneck_kernel(x_ref, w_ref, gamma_ref, beta_ref, o_ref):
    # Linear (bias omitted -- cancels exactly in batch-stat BatchNorm).
    # x arrives f32 and is cast to bf16 here (VPU, hidden under the MXU); the weight
    # tile arrives pre-cast bf16.  Contraction over F, f32 accumulation on the MXU.
    x_bf = x_ref[...].astype(jnp.bfloat16)
    y = lax.dot_general(
        x_bf, w_ref[...],
        dimension_numbers=(((1,), (1,)), ((), ())),   # y = x @ W.T, no XLU transpose
        preferred_element_type=jnp.float32,
    )                                                  # (N, TILE_D) f32

    # BatchNorm1d (training forward): one-pass batch stats over the same read of y.
    n = y.shape[0]
    inv_n = 1.0 / n
    s1 = jnp.sum(y, axis=0, keepdims=True)             # (1, TILE_D)
    s2 = jnp.sum(y * y, axis=0, keepdims=True)         # (1, TILE_D)
    mean = s1 * inv_n
    # Clamp: one-pass variance can go slightly negative from cancellation.
    var = jnp.maximum(s2 * inv_n - mean * mean, 0.0)   # biased variance

    # Fold normalize + affine into a single FMA pass over (N, TILE_D).
    scale = gamma_ref[...] * lax.rsqrt(var + BN_EPS)   # EUP rsqrt (free slot)
    shift = beta_ref[...] - mean * scale
    o_ref[...] = (y * scale + shift).astype(o_ref.dtype)

    # Dropout: identity (eval-mode).
    # TODO(synk): training-mode stochastic dropout mask omitted (PyTorch RNG parity).


def _pick_tile_d(d):
    # Largest multiple-of-128 tile that still yields >= 2 grid steps, so the
    # "parallel" D axis can shard across both v7x TensorCores (one extra grid step
    # costs ~0.35 us on v5e/v6e -- negligible).
    for cand in (512, 256, 128):
        if d % cand == 0 and d // cand >= 2:
            return cand
    # Small / odd D: fall back to the largest dividing tile (or the full dim).
    for cand in (512, 256, 128):
        if d % cand == 0:
            return cand
    return d


def _vmem_capacity_bytes():
    try:
        info = pltpu.get_tpu_info()
        cap = getattr(info, "vmem_capacity_bytes", None)
        if cap:
            return int(cap)
    except Exception:
        pass
    return 64 << 20  # conservative fallback (v7x per-TC capacity)


def prepare_weight(weight, matmul_dtype=jnp.bfloat16):
    """Cast the Linear weight once, OUTSIDE the hot path (cache and reuse)."""
    return weight.astype(matmul_dtype)


def feat_bottleneck_forward(x, weight, bias, gamma, beta, *,
                            tile_d=None, matmul_dtype=jnp.bfloat16,
                            out_dtype=jnp.float32):
    """x: (N, F) f32; weight: (D, F) (PyTorch Linear layout, ideally pre-cast via
    prepare_weight); bias/gamma/beta: (D,).

    The Linear bias is accepted for interface parity but unused: under
    batch-statistic BatchNorm a per-feature constant cancels in (y - mean).
    """
    del bias  # cancels exactly under batch-stat BatchNorm (see docstring)

    n, f = x.shape
    d = weight.shape[0]
    td = tile_d if tile_d is not None else _pick_tile_d(d)
    assert d % td == 0, "tile_d must divide bottleneck_dim"
    grid_d = d // td

    # Weight should be cached in bf16 outside the hot path; cast here only if not.
    w_mm = weight if weight.dtype == matmul_dtype else weight.astype(matmul_dtype)
    g2 = gamma.reshape(1, d).astype(jnp.float32)
    be2 = beta.reshape(1, d).astype(jnp.float32)

    out_isz = jnp.dtype(out_dtype).itemsize
    w_isz = jnp.dtype(matmul_dtype).itemsize
    vmem_est = (
        n * f * 4                  # x resident (f32, Buffered(1) -- single copy)
        + n * f * 2                # in-kernel bf16 copy of x
        + 2 * td * f * w_isz       # weight tile (double-buffered, bf16)
        + 2 * 2 * td * 4           # gamma/beta tiles
        + 2 * n * td * out_isz     # output tile (double-buffered)
        + 4 * n * td * 4           # in-kernel f32 temporaries (y, y*y, FMA)
    )
    # Generation-aware cap: ~75% of per-core VMEM (≈48 MiB v7x, ≈96 MiB v5e/v6e),
    # always above the small v5e scoped default; ~1.5x footprint + fixed headroom
    # for Mosaic internal scratch.
    cap = int(0.75 * _vmem_capacity_bytes())
    vmem_limit = int(min(cap, max(32 << 20, int(1.5 * vmem_est) + (8 << 20))))

    return pl.pallas_call(
        _feat_bottleneck_kernel,
        out_shape=jax.ShapeDtypeStruct((n, d), out_dtype),
        grid_spec=pltpu.PrefetchScalarGridSpec(
            num_scalar_prefetch=0,
            grid=(grid_d,),
            in_specs=[
                # x: constant index_map -> single buffer (no pointless double-buffer).
                pl.BlockSpec((n, f), lambda i: (0, 0),
                             pipeline_mode=pl.Buffered(1)),
                pl.BlockSpec((td, f), lambda i: (i, 0)),      # weight tile (bf16)
                pl.BlockSpec((1, td), lambda i: (0, i)),      # gamma tile
                pl.BlockSpec((1, td), lambda i: (0, i)),      # beta tile
            ],
            out_specs=pl.BlockSpec((n, td), lambda i: (0, i)),
        ),
        compiler_params=pltpu.CompilerParams(
            dimension_semantics=("parallel",),   # D tiles independent -> 2 TCs on v7x
            vmem_limit_bytes=vmem_limit,
        ),
    )(x, w_mm, g2, be2)


def init_params(key, feature_dim, bottleneck_dim):
    """Deterministic init mirroring init_weights() for Linear + BatchNorm defaults."""
    k_w, _ = jax.random.split(key)
    # xavier_normal_: std = sqrt(2 / (fan_in + fan_out))
    std = (2.0 / (feature_dim + bottleneck_dim)) ** 0.5
    weight = std * jax.random.normal(k_w, (bottleneck_dim, feature_dim), jnp.float32)
    bias = jnp.zeros((bottleneck_dim,), jnp.float32)
    # init_weights is applied only to the Linear, so BatchNorm keeps defaults (1, 0).
    gamma = jnp.ones((bottleneck_dim,), jnp.float32)
    beta = jnp.zeros((bottleneck_dim,), jnp.float32)
    return weight, bias, gamma, beta


if __name__ == "__main__":
    key = jax.random.PRNGKey(0)
    k_x, k_p, k_b = jax.random.split(key, 3)

    N, FEATURE_DIM, BOTTLENECK_DIM = 8, 32, 256
    x = jax.random.normal(k_x, (N, FEATURE_DIM), jnp.float32)
    weight, bias, gamma, beta = init_params(k_p, FEATURE_DIM, BOTTLENECK_DIM)
    # Use a nonzero bias in the test to verify it cancels exactly under batch-stat BN.
    bias = 0.1 * jax.random.normal(k_b, (BOTTLENECK_DIM,), jnp.float32)

    # Cache the bf16 weight once, outside the hot path.
    w_cached = prepare_weight(weight)

    # Default tile picker -> td=128, grid=(2,): exercises the megacore-friendly path.
    out = feat_bottleneck_forward(x, w_cached, bias, gamma, beta)
    out = jax.block_until_ready(out)
    assert out.shape == (N, BOTTLENECK_DIM)

    # (a) Tight check against a reference using the same bf16-matmul / f32-accumulate
    #     recipe (verifies kernel structure + the bias cancellation).
    y_bf = jnp.dot(x.astype(jnp.bfloat16), w_cached.T,
                   preferred_element_type=jnp.float32) + bias
    m_bf = y_bf.mean(axis=0, keepdims=True)
    v_bf = ((y_bf - m_bf) ** 2).mean(axis=0, keepdims=True)
    ref_bf = (y_bf - m_bf) / jnp.sqrt(v_bf + BN_EPS) * gamma + beta
    assert jnp.allclose(out, ref_bf, atol=5e-3, rtol=5e-3)

    # (b) Loose check against the exact f32 PyTorch-semantics reference (catches any
    #     drift introduced by the bf16 matmul recipe itself).
    y32 = x @ weight.T + bias
    m32 = y32.mean(axis=0, keepdims=True)
    v32 = ((y32 - m32) ** 2).mean(axis=0, keepdims=True)
    ref32 = (y32 - m32) / jnp.sqrt(v32 + BN_EPS) * gamma + beta
    assert jnp.allclose(out, ref32, atol=5e-2, rtol=5e-2)

    print("KERNEL_OK")
</pallas_src>

<mosaic_0001>
module attributes {stable_mosaic.version = 11 : i64} {
  func.func @_feat_bottleneck_kernel(%arg0: i32, %arg1: memref<8x32xf32, #tpu.memory_space<vmem>>, %arg2: memref<128x32xbf16, #tpu.memory_space<vmem>>, %arg3: memref<1x128xf32, #tpu.memory_space<vmem>>, %arg4: memref<1x128xf32, #tpu.memory_space<vmem>>, %arg5: memref<8x128xf32, #tpu.memory_space<vmem>>) attributes {dimension_semantics = [#tpu.dimension_semantics<parallel>], iteration_bounds = array<i64: 2>, scalar_prefetch = 0 : i64, scratch_operands = 0 : i64, tpu.core_type = #tpu.core_type<tc>, window_params = [{pipeline_mode = #tpu.pipeline_mode<synchronous>, transform_indices = @transform_0, window_bounds = array<i64: 8, 32>}, {transform_indices = @transform_1, window_bounds = array<i64: 128, 32>}, {transform_indices = @transform_2, window_bounds = array<i64: 1, 128>}, {transform_indices = @transform_3, window_bounds = array<i64: 1, 128>}, {transform_indices = @transform_4, window_bounds = array<i64: 8, 128>}]} {
    %c0 = arith.constant 0 : index
    %c0_0 = arith.constant 0 : index
    %0 = vector.load %arg1[%c0, %c0_0] : memref<8x32xf32, #tpu.memory_space<vmem>>, vector<8x32xf32>
    %1 = arith.truncf %0 : vector<8x32xf32> to vector<8x32xbf16>
    %c0_1 = arith.constant 0 : index
    %c0_2 = arith.constant 0 : index
    %2 = vector.load %arg2[%c0_1, %c0_2] : memref<128x32xbf16, #tpu.memory_space<vmem>>, vector<128x32xbf16>
    %cst = arith.constant dense<0.000000e+00> : vector<8x128xf32>
    %3 = tpu.matmul %1, %2, %cst {dimension_numbers = #tpu.dot_dimension_numbers<[1], [1], [0], [0], [0, 0, 1, 0], [], []>} : vector<8x32xbf16>, vector<128x32xbf16>, vector<8x128xf32> -> vector<8x128xf32>
    %cst_3 = arith.constant dense<0.000000e+00> : vector<128xf32>
    %4 = vector.multi_reduction <add>, %3, %cst_3 [0] : vector<8x128xf32> to vector<128xf32>
    %5 = vector.shape_cast %4 : vector<128xf32> to vector<1x128xf32>
    %6 = arith.mulf %3, %3 : vector<8x128xf32>
    %cst_4 = arith.constant dense<0.000000e+00> : vector<128xf32>
    %7 = vector.multi_reduction <add>, %6, %cst_4 [0] : vector<8x128xf32> to vector<128xf32>
    %8 = vector.shape_cast %7 : vector<128xf32> to vector<1x128xf32>
    %cst_5 = arith.constant 1.250000e-01 : f32
    %9 = vector.broadcast %cst_5 : f32 to vector<1x128xf32>
    %10 = arith.mulf %5, %9 : vector<1x128xf32>
    %cst_6 = arith.constant 1.250000e-01 : f32
    %11 = vector.broadcast %cst_6 : f32 to vector<1x128xf32>
    %12 = arith.mulf %8, %11 : vector<1x128xf32>
    %13 = arith.mulf %10, %10 : vector<1x128xf32>
    %14 = arith.subf %12, %13 : vector<1x128xf32>
    %cst_7 = arith.constant 0.000000e+00 : f32
    %15 = vector.broadcast %cst_7 : f32 to vector<1x128xf32>
    %16 = arith.maximumf %14, %15 : vector<1x128xf32>
    %c0_8 = arith.constant 0 : index
    %c0_9 = arith.constant 0 : index
    %17 = vector.load %arg3[%c0_8, %c0_9] : memref<1x128xf32, #tpu.memory_space<vmem>>, vector<1x128xf32>
    %cst_10 = arith.constant 9.99999974E-6 : f32
    %18 = vector.broadcast %cst_10 : f32 to vector<1x128xf32>
    %19 = arith.addf %16, %18 : vector<1x128xf32>
    %20 = math.rsqrt %19 : vector<1x128xf32>
    %21 = arith.mulf %17, %20 : vector<1x128xf32>
    %c0_11 = arith.constant 0 : index
    %c0_12 = arith.constant 0 : index
    %22 = vector.load %arg4[%c0_11, %c0_12] : memref<1x128xf32, #tpu.memory_space<vmem>>, vector<1x128xf32>
    %23 = arith.mulf %10, %21 : vector<1x128xf32>
    %24 = arith.subf %22, %23 : vector<1x128xf32>
    %25 = vector.broadcast %21 : vector<1x128xf32> to vector<8x128xf32>
    %26 = arith.mulf %3, %25 : vector<8x128xf32>
    %27 = vector.broadcast %24 : vector<1x128xf32> to vector<8x128xf32>
    %28 = arith.addf %26, %27 : vector<8x128xf32>
    %c0_13 = arith.constant 0 : index
    %c0_14 = arith.constant 0 : index
    %29 = vector.load %arg5[%c0_13, %c0_14] : memref<8x128xf32, #tpu.memory_space<vmem>>, vector<8x128xf32>
    tpu.vector_store %arg5[%c0_13, %c0_14], %28 {strides = array<i32>} : memref<8x128xf32, #tpu.memory_space<vmem>>, vector<8x128xf32>,
    return
  }
  func.func @transform_0(%arg0: i32) -> (i32, i32) {
    %c0_i32 = arith.constant 0 : i32
    %c0_i32_0 = arith.constant 0 : i32
    %c0_i32_1 = arith.constant 0 : i32
    return %c0_i32, %c0_i32_0 : i32, i32
  }
  func.func @transform_1(%arg0: i32) -> (i32, i32) {
    %c0_i32 = arith.constant 0 : i32
    %c0_i32_0 = arith.constant 0 : i32
    return %arg0, %c0_i32 : i32, i32
  }
  func.func @transform_2(%arg0: i32) -> (i32, i32) {
    %c0_i32 = arith.constant 0 : i32
    %c0_i32_0 = arith.constant 0 : i32
    return %c0_i32, %arg0 : i32, i32
  }
  func.func @transform_3(%arg0: i32) -> (i32, i32) {
    %c0_i32 = arith.constant 0 : i32
    %c0_i32_0 = arith.constant 0 : i32
    return %c0_i32, %arg0 : i32, i32
  }
  func.func @transform_4(%arg0: i32) -> (i32, i32) {
    %c0_i32 = arith.constant 0 : i32
    %c0_i32_0 = arith.constant 0 : i32
    return %c0_i32, %arg0 : i32, i32
  }
}

</mosaic_0001>

<llo_original>
// kernel: tpu_custom_call.1
$region0: #{tpu_custom_call.1}
  #allocation0 [shape = 'u32[]', space=smem, size = 0x4, offset = 0x4, fixed_abs, tag = 'smem constant byte address 0x4 - core index']
  #allocation1 [shape = 'u32[144,128]{1,0:T(1,128)}', space=vmem, size = 0x12000, scoped, tag = 'internal scratch']
  %s0 = inlined_call_operand.vmem [shape: f32[8,32], index: 0, kind: input, shape index: {}]
  %s1 = inlined_call_operand.vmem [shape: bf16[256,32], index: 1, kind: input, shape index: {}]
  %s2 = inlined_call_operand.vmem [shape: f32[1,256], index: 2, kind: input, shape index: {}]
  %s3 = inlined_call_operand.vmem [shape: f32[1,256], index: 3, kind: input, shape index: {}]
  %s4 = inlined_call_operand.hbm [shape: f32[8,256], index: 4, kind: output, shape index: {}]
  %s5 = sld [smem:[#allocation0]]
  $region49: #{tpu_custom_call.1} parent=0
    _
  %s7 = ssub.s32 1, %s5
  %s8 = scalar_select 0, %s7, %s5
  $region1: #{tpu_custom_call.1} parent=0
    #allocation2 [shape = 'u8[8192]{0}', space=vmem, size = 0x2000, scoped, tag = 'output window, operand 0']
    #allocation3 [shape = 's32[2]{0}', space=sflag, size = 0x8, scoped, tag = 'scoped memory for tpu_custom_call.1']
    %9 = vsyncpa [#allocation3], 0
    %s10 = scalar_lea.sflag [#allocation3], 1
    %11 = vsyncpa %s10, 0
    loop: start=0, step=1, limit=4
    $region2: #{tpu_custom_call.1} parent=1 // loop_pre_header
      _
    $region3: #{tpu_custom_call.1} parent=1 // loop_header
      %s13 = sphi 0, %s17
      %p14 = scmp.ge.s32.totalorder %s13, 4
      %s21 = sphi 0, %s21
      %s23 = sphi 0, %s21
      %s24 = sphi 0, %s23
      %s38 = sphi 0, %s24
      %s44 = sphi 0, %s46
      %s47 = sphi 0, %s44
      %s48 = sphi 0, %s47
      %s64 = sphi 0, %s48
      %s70 = sphi 0, %s72
      %s73 = sphi 0, %s70
      %s74 = sphi 0, %s73
      %s90 = sphi 0, %s74
      %s96 = sphi 0, %s98
      %s99 = sphi 0, %s96
      %s100 = sphi 0, %s99
      %s116 = sphi 0, %s100
      %s122 = sphi 0, %s124
      %s125 = sphi 0, %s122
      %s126 = sphi 0, %s125
      %s142 = sphi 0, %s126
    $region4: #{tpu_custom_call.1} parent=1 // loop_header_branch
      %16 = sbr.rel (%p14) target = $region8
    $region5: #{tpu_custom_call.1} parent=1 // loop_body
      %s18 = ssub.s32 %s13, 1
      %s19 = ssub.s32 %s13, 2
      %s20 = sadd.s32 %s13, 1
      %s22 = sadd.s32 %s21, 1
      %p25 = scmp.eq.s32.totalorder %s13, 1
      %p26 = scmp.ne.s32.totalorder %s21, %s23
      %p27 = scmp.eq.s32.totalorder %s13, 0
      %p28 = por %p26, %p27
      %p29 = scmp.ne.s32.totalorder %s21, %s23
      %p30 = scmp.eq.s32.totalorder %s18, 1
      %p31 = por %p29, %p30
      %p32 = scmp.ne.s32.totalorder %s23, %s24
      %p33 = scmp.eq.s32.totalorder %s18, 0
      %p34 = por %p32, %p33
      %p35 = scmp.ne.s32.totalorder %s23, %s24
      %p36 = scmp.eq.s32.totalorder %s19, 1
      %p37 = por %p35, %p36
      %p39 = scmp.ne.s32.totalorder %s24, %s38
      %p40 = scmp.eq.s32.totalorder %s19, 0
      %p41 = por %p39, %p40
      %s42 = ssub.s32 %s13, %s20
      %p43 = scmp.eq.s32.totalorder %s42, 0
      %s45 = sadd.s32 %s44, 1
      %s46 = scalar_select %p43, %s44, %s45
      %p49 = pneg %p43
      %p50 = scmp.eq.s32.totalorder %s13, 1
      %p51 = por %p49, %p50
      %p52 = scmp.ne.s32.totalorder %s44, %s47
      %p53 = scmp.eq.s32.totalorder %s13, 0
      %p54 = por %p52, %p53
      %p55 = scmp.ne.s32.totalorder %s44, %s47
      %p56 = scmp.eq.s32.totalorder %s18, 1
      %p57 = por %p55, %p56
      %p58 = scmp.ne.s32.totalorder %s47, %s48
      %p59 = scmp.eq.s32.totalorder %s18, 0
      %p60 = por %p58, %p59
      %p61 = scmp.ne.s32.totalorder %s47, %s48
      %p62 = scmp.eq.s32.totalorder %s19, 1
      %p63 = por %p61, %p62
      %p65 = scmp.ne.s32.totalorder %s48, %s64
      %p66 = scmp.eq.s32.totalorder %s19, 0
      %p67 = por %p65, %p66
      %s68 = ssub.s32 %s13, %s20
      %p69 = scmp.eq.s32.totalorder %s68, 0
      %s71 = sadd.s32 %s70, 1
      %s72 = scalar_select %p69, %s70, %s71
      %p75 = pneg %p69
      %p76 = scmp.eq.s32.totalorder %s13, 1
      %p77 = por %p75, %p76
      %p78 = scmp.ne.s32.totalorder %s70, %s73
      %p79 = scmp.eq.s32.totalorder %s13, 0
      %p80 = por %p78, %p79
      %p81 = scmp.ne.s32.totalorder %s70, %s73
      %p82 = scmp.eq.s32.totalorder %s18, 1
      %p83 = por %p81, %p82
      %p84 = scmp.ne.s32.totalorder %s73, %s74
      %p85 = scmp.eq.s32.totalorder %s18, 0
      %p86 = por %p84, %p85
      %p87 = scmp.ne.s32.totalorder %s73, %s74
      %p88 = scmp.eq.s32.totalorder %s19, 1
      %p89 = por %p87, %p88
      %p91 = scmp.ne.s32.totalorder %s74, %s90
      %p92 = scmp.eq.s32.totalorder %s19, 0
      %p93 = por %p91, %p92
      %s94 = ssub.s32 %s13, %s20
      %p95 = scmp.eq.s32.totalorder %s94, 0
      %s97 = sadd.s32 %s96, 1
      %s98 = scalar_select %p95, %s96, %s97
      %p101 = pneg %p95
      %p102 = scmp.eq.s32.totalorder %s13, 1
      %p103 = por %p101, %p102
      %p104 = scmp.ne.s32.totalorder %s96, %s99
      %p105 = scmp.eq.s32.totalorder %s13, 0
      %p106 = por %p104, %p105
      %p107 = scmp.ne.s32.totalorder %s96, %s99
      %p108 = scmp.eq.s32.totalorder %s18, 1
      %p109 = por %p107, %p108
      %p110 = scmp.ne.s32.totalorder %s99, %s100
      %p111 = scmp.eq.s32.totalorder %s18, 0
      %p112 = por %p110, %p111
      %p113 = scmp.ne.s32.totalorder %s99, %s100
      %p114 = scmp.eq.s32.totalorder %s19, 1
      %p115 = por %p113, %p114
      %p117 = scmp.ne.s32.totalorder %s100, %s116
      %p118 = scmp.eq.s32.totalorder %s19, 0
      %p119 = por %p117, %p118
      %s120 = ssub.s32 %s13, %s20
      %p121 = scmp.eq.s32.totalorder %s120, 0
      %s123 = sadd.s32 %s122, 1
      %s124 = scalar_select %p121, %s122, %s123
      %p127 = pneg %p121
      %p128 = scmp.eq.s32.totalorder %s13, 1
      %p129 = por %p127, %p128
      %p130 = scmp.ne.s32.totalorder %s122, %s125
      %p131 = scmp.eq.s32.totalorder %s13, 0
      %p132 = por %p130, %p131
      %p133 = scmp.ne.s32.totalorder %s122, %s125
      %p134 = scmp.eq.s32.totalorder %s18, 1
      %p135 = por %p133, %p134
      %p136 = scmp.ne.s32.totalorder %s125, %s126
      %p137 = scmp.eq.s32.totalorder %s18, 0
      %p138 = por %p136, %p137
      %p139 = scmp.ne.s32.totalorder %s125, %s126
      %p140 = scmp.eq.s32.totalorder %s19, 1
      %p141 = por %p139, %p140
      %p143 = scmp.ne.s32.totalorder %s126, %s142
      %p144 = scmp.eq.s32.totalorder %s19, 0
      %p145 = por %p143, %p144
      %p146 = scmp.le.s32.totalorder 1, %s13
      %p147 = scmp.lt.s32.totalorder %s13, 3
      %p148 = pnand %p146, %p147
      %p149 = pneg %p148
      // Predicated region
      $region9: #{tpu_custom_call.1} parent=5 // pred_check
        _
      $region10: #{tpu_custom_call.1} parent=5 // pred_check_branch
        %151 = sbr.rel (%p148) target = $region12
      $region11: #{tpu_custom_call.1} parent=5 // pred_region
        %s152 = ssub.s32 %s13, 1
        // Predicated region
        $region13: #{tpu_custom_call.1} parent=11 // pred_check
          %p153 = pneg %p34
        $region14: #{tpu_custom_call.1} parent=11 // pred_check_branch
          %155 = sbr.rel (%p153) target = $region16
        $region15: #{tpu_custom_call.1} parent=11 // pred_region
          _
        $region16: #{tpu_custom_call.1} parent=11 // pred_fallthru
          _
      $region12: #{tpu_custom_call.1} parent=5 // pred_fallthru
        _
      %p156 = scmp.lt.s32.totalorder %s13, 2
      // Predicated region
      $region17: #{tpu_custom_call.1} parent=5 // pred_check
        %p157 = pneg %p156
      $region18: #{tpu_custom_call.1} parent=5 // pred_check_branch
        %159 = sbr.rel (%p157) target = $region20
      $region19: #{tpu_custom_call.1} parent=5 // pred_region
        // Predicated region
        $region21: #{tpu_custom_call.1} parent=19 // pred_check
          %p160 = pneg %p54
        $region22: #{tpu_custom_call.1} parent=19 // pred_check_branch
          %162 = sbr.rel (%p160) target = $region24
        $region23: #{tpu_custom_call.1} parent=19 // pred_region
          %s163 = smul.u32 16, %s13
          %p164 = scmp.lt.s32.totalorder %s163, 31
          %s165 = scalar_select %p164, %s163, 31
          %s166 = smul.addr %s165, 4
          %s167 = scalar_lea.vmem %s1, %s166
          %s168 = smul.u32 16, %s13
        $region24: #{tpu_custom_call.1} parent=19 // pred_fallthru
          _
        // Predicated region
        $region25: #{tpu_custom_call.1} parent=19 // pred_check
          %p169 = pneg %p80
        $region26: #{tpu_custom_call.1} parent=19 // pred_check_branch
          %171 = sbr.rel (%p169) target = $region28
        $region27: #{tpu_custom_call.1} parent=19 // pred_region
          %p172 = scmp.lt.s32.totalorder %s13, 1
          %s173 = scalar_select %p172, %s13, 1
          %s174 = scalar_lea.vmem %s2, %s173
        $region28: #{tpu_custom_call.1} parent=19 // pred_fallthru
          _
        // Predicated region
        $region29: #{tpu_custom_call.1} parent=19 // pred_check
          %p175 = pneg %p106
        $region30: #{tpu_custom_call.1} parent=19 // pred_check_branch
          %177 = sbr.rel (%p175) target = $region32
        $region31: #{tpu_custom_call.1} parent=19 // pred_region
          %p178 = scmp.lt.s32.totalorder %s13, 1
          %s179 = scalar_select %p178, %s13, 1
          %s180 = scalar_lea.vmem %s3, %s179
        $region32: #{tpu_custom_call.1} parent=19 // pred_fallthru
          _
      $region20: #{tpu_custom_call.1} parent=5 // pred_fallthru
        _
      %p181 = scmp.le.s32.totalorder 1, %s13
      %p182 = scmp.lt.s32.totalorder %s13, 3
      %p183 = pnand %p181, %p182
      %p184 = pneg %p183
      // Predicated region
      $region33: #{tpu_custom_call.1} parent=5 // pred_check
        _
      $region34: #{tpu_custom_call.1} parent=5 // pred_check_branch
        %186 = sbr.rel (%p183) target = $region36
      $region35: #{tpu_custom_call.1} parent=5 // pred_region
        %s187 = ssub.s32 %s13, 1
        %p188 = pneg %p34
        %p189 = pneg %p31
        %s190 = smul.u32 16, %s18
        %p191 = scmp.lt.s32.totalorder %s190, 31
        %s192 = scalar_select %p191, %s190, 31
        %s193 = smul.addr %s192, 4
        %s194 = scalar_lea.vmem %s1, %s193
        %p195 = pneg %p60
        %p196 = pneg %p57
        %p197 = scmp.lt.s32.totalorder %s18, 1
        %s198 = scalar_select %p197, %s18, 1
        %s199 = scalar_lea.vmem %s2, %s198
        %p200 = pneg %p86
        %p201 = pneg %p83
        %p202 = scmp.lt.s32.totalorder %s18, 1
        %s203 = scalar_select %p202, %s18, 1
        %s204 = scalar_lea.vmem %s3, %s203
        %p205 = pneg %p112
        %p206 = pneg %p109
        %p207 = pneg %p138
        %p208 = pneg %p135
        %s209 = sand.u32 %s125, 1
        %s210 = scalar_lea.sflag [#allocation3], %s209
        %s211 = sand.u32 %s125, 1
        %s212 = smul.addr %s211, 8
        %s213 = scalar_lea.vmem [#allocation2], %s212
        %s214 = smul.u32 16, %s18
        %p215 = scmp.lt.s32.totalorder %s214, 31
        %s216 = scalar_select %p215, %s214, 31
        %s217 = smul.addr %s216, 4
        %s218 = scalar_lea.vmem %s1, %s217
        %s219 = smul.u32 16, %s18
        %p220 = scmp.lt.s32.totalorder %s18, 1
        %s221 = scalar_select %p220, %s18, 1
        %s222 = scalar_lea.vmem %s2, %s221
        %p223 = scmp.lt.s32.totalorder %s18, 1
        %s224 = scalar_select %p223, %s18, 1
        %s225 = scalar_lea.vmem %s3, %s224
        %v227 = vld [vmem:[%s0] sm:$0xff]
        %v228 = vpack.c.bf16 %v227, %v227
        %v229 = vld [vmem:[%s218] sm:$0xf]
        %v230 = vld [vmem:[%s218 + $0x4] sm:$0xf]
        %v231 = vld [vmem:[%s218 + $0x8] sm:$0xf]
        %v232 = vld [vmem:[%s218 + $0xc] sm:$0xf]
        %v233 = vld [vmem:[%s218 + $0x10] sm:$0xf]
        %v234 = vld [vmem:[%s218 + $0x14] sm:$0xf]
        %v235 = vld [vmem:[%s218 + $0x18] sm:$0xf]
        %v236 = vld [vmem:[%s218 + $0x1c] sm:$0xf]
        %v237 = vld [vmem:[%s218 + $0x20] sm:$0xf]
        %v238 = vld [vmem:[%s218 + $0x24] sm:$0xf]
        %v239 = vld [vmem:[%s218 + $0x28] sm:$0xf]
        %v240 = vld [vmem:[%s218 + $0x2c] sm:$0xf]
        %v241 = vld [vmem:[%s218 + $0x30] sm:$0xf]
        %v242 = vld [vmem:[%s218 + $0x34] sm:$0xf]
        %v243 = vld [vmem:[%s218 + $0x38] sm:$0xf]
        %v244 = vld [vmem:[%s218 + $0x3c] sm:$0xf]
        %v261 = vunpack.c.l.b16 %v229
        %v262 = vunpack.c.l.b16 %v230
        %v263 = vunpack.c.l.b16 %v231
        %v264 = vunpack.c.l.b16 %v232
        %v265 = vunpack.c.l.b16 %v233
        %v266 = vunpack.c.l.b16 %v234
        %v267 = vunpack.c.l.b16 %v235
        %v268 = vunpack.c.l.b16 %v236
        %v269 = vunpack.c.l.b16 %v237
        %v270 = vunpack.c.l.b16 %v238
        %v271 = vunpack.c.l.b16 %v239
        %v272 = vunpack.c.l.b16 %v240
        %v273 = vunpack.c.l.b16 %v241
        %v274 = vunpack.c.l.b16 %v242
        %v275 = vunpack.c.l.b16 %v243
        %v276 = vunpack.c.l.b16 %v244
        %v277 = vpack.c.b16 %v262, %v261
        %v278 = vpack.c.b16 %v264, %v263
        %v279 = vpack.c.b16 %v266, %v265
        %v280 = vpack.c.b16 %v268, %v267
        %v281 = vpack.c.b16 %v270, %v269
        %v282 = vpack.c.b16 %v272, %v271
        %v283 = vpack.c.b16 %v274, %v273
        %v284 = vpack.c.b16 %v276, %v275
        %vm285 = vcmask 261120
        %v287 = vsel %vm285, %v228, 0
        %v290 = vsel %vm285, %v277, 0
        %v293 = vsel %vm285, %v278, 0
        %v296 = vsel %vm285, %v279, 0
        %v299 = vsel %vm285, %v280, 0
        %v302 = vsel %vm285, %v281, 0
        %v305 = vsel %vm285, %v282, 0
        %v308 = vsel %vm285, %v283, 0
        %v311 = vsel %vm285, %v284, 0
        %313 = vmatprep.subr.bf16.mxu0 0
        %314 = vmatpush1.bf16.xpose.msra.mxu0 %v311
        %315 = vmatprep.subr.bf16.mxu0 0
        %316 = vmatpush1.bf16.xpose.msra.mxu0 %v308
        %317 = vmatprep.subr.bf16.mxu0 0
        %318 = vmatpush1.bf16.xpose.msra.mxu0 %v305
        %319 = vmatprep.subr.bf16.mxu0 0
        %320 = vmatpush1.bf16.xpose.msra.mxu0 %v302
        %321 = vmatprep.subr.bf16.mxu0 0
        %322 = vmatpush1.bf16.xpose.msra.mxu0 %v299
        %323 = vmatprep.subr.bf16.mxu0 0
        %324 = vmatpush1.bf16.xpose.msra.mxu0 %v296
        %325 = vmatprep.subr.bf16.mxu0 0
        %326 = vmatpush1.bf16.xpose.msra.mxu0 %v293
        %327 = vmatprep.subr.bf16.mxu0 0
        %328 = vmatpush1.bf16.xpose.msra.mxu0 %v290
        %329 = vmatprep.subr.bf16.mxu0 0
        %330 = vmatpush2.bf16.xpose.msra.mxu0 0
        %331 = vmatprep.subr.bf16.mxu0 0
        %332 = vmatpush2.bf16.xpose.msra.mxu0 0
        %333 = vmatprep.subr.bf16.mxu0 0
        %334 = vmatpush2.bf16.xpose.msra.mxu0 0
        %335 = vmatprep.subr.bf16.mxu0 0
        %336 = vmatpush2.bf16.xpose.msra.mxu0 0
        %337 = vmatprep.subr.bf16.mxu0 0
        %338 = vmatpush2.bf16.xpose.msra.mxu0 0
        %339 = vmatprep.subr.bf16.mxu0 0
        %340 = vmatpush2.bf16.xpose.msra.mxu0 0
        %341 = vmatprep.subr.bf16.mxu0 0
        %342 = vmatpush2.bf16.xpose.msra.mxu0 0
        %343 = vmatprep.subr.bf16.mxu0 0
        %344 = vmatpush2.bf16.xpose.msra.mxu0 0
        %345 = vmatprep.mubr.bf16.mxu0 0
        %346 = vmatmul.mubr.bf16.gmra.mxu0 %v287
        %v347 = vpop.f32.mrf.mxu0
        %v348 = vadd.f32 0.0, %v347
        %v349 = vpop.f32.mrf.mxu0
        %v350 = vpop.f32.mrf.mxu0
        %v351 = vpop.f32.mrf.mxu0
        %352 = vdwg.mxu0
        %v353 = vrot.slane %v348, 4
        %v354 = vadd.f32 %v348, %v353
        %v355 = vrot.slane %v354, 2
        %v356 = vadd.f32 %v354, %v355
        %v357 = vrot.slane %v356, 1
        %v358 = vadd.f32 %v356, %v357
        %v359 = vmul.f32 %v348, %v348
        %v360 = vrot.slane %v359, 4
        %v361 = vadd.f32 %v359, %v360
        %v362 = vrot.slane %v361, 2
        %v363 = vadd.f32 %v361, %v362
        %v364 = vrot.slane %v363, 1
        %v365 = vadd.f32 %v363, %v364
        %v366 = vmul.f32 %v358, 0.125
        %v367 = vmul.f32 %v365, 0.125
        %v368 = vmul.f32 %v366, %v366
        %v369 = vsub.f32 %v367, %v368
        %v370 = vmax.f32 %v369, 0.0
        %v371 = vld [vmem:[%s222] sm:$0x1]
        %v372 = vadd.f32 %v370, 1e-05
        %v373 = vrsqrt.pop %v372
        %v374 = vmul.f32 %v371, %v373
        %v375 = vld [vmem:[%s225] sm:$0x1]
        %v376 = vmul.f32 %v366, %v374
        %v377 = vsub.f32 %v375, %v376
        %v379 = vlaneseq
        %v380 = vshrl.u32 %v379, 7
        %v381 = vsub.s32 0, %v380
        %v382 = vrot.slane %v374, %v381
        %v384 = vmul.f32 %v348, %v382
        %v386 = vlaneseq
        %v387 = vshrl.u32 %v386, 7
        %v388 = vsub.s32 0, %v387
        %v389 = vrot.slane %v377, %v388
        %v391 = vadd.f32 %v384, %v389
        %392 = vst [vmem:[%s213] sm:$0xff] %v391
        %s393 = sand.u32 %s125, 1
        %s394 = scalar_lea.sflag [#allocation3], %s393
        %s395 = sand.u32 %s125, 1
        %s396 = smul.addr %s395, 8
        %s397 = scalar_lea.vmem [#allocation2], %s396
        // Predicated region
        $region37: #{tpu_custom_call.1} parent=35 // pred_check
          %p398 = pneg %p135
        $region38: #{tpu_custom_call.1} parent=35 // pred_check_branch
          %400 = sbr.rel (%p398) target = $region40
        $region39: #{tpu_custom_call.1} parent=35 // pred_region
          %s402 = ssub.s32 128, 128
          %403 = vsyncadd %s394, %s402
          %s404 = smul.addr %s18, 128
          %s405 = scalar_lea.hbm %s4, %s404
          %s407 = sshll.u32 %s397, 4
          %s408 = int_to_ptr.vmem [resolvable:$true] %s407
          %410 = dma.vmem_to_hbm [thread:$0]  %s408, 128, %s405, %s394
        $region40: #{tpu_custom_call.1} parent=35 // pred_fallthru
          _
      $region36: #{tpu_custom_call.1} parent=5 // pred_fallthru
        _
      %p411 = scmp.le.s32.totalorder 2, %s13
      // Predicated region
      $region41: #{tpu_custom_call.1} parent=5 // pred_check
        %p412 = pneg %p411
      $region42: #{tpu_custom_call.1} parent=5 // pred_check_branch
        %414 = sbr.rel (%p412) target = $region44
      $region43: #{tpu_custom_call.1} parent=5 // pred_region
        %s415 = ssub.s32 %s13, 2
        // Predicated region
        $region45: #{tpu_custom_call.1} parent=43 // pred_check
          %p416 = pneg %p141
        $region46: #{tpu_custom_call.1} parent=43 // pred_check_branch
          %418 = sbr.rel (%p416) target = $region48
        $region47: #{tpu_custom_call.1} parent=43 // pred_region
          %s419 = sand.u32 %s126, 1
          %s420 = scalar_lea.sflag [#allocation3], %s419
          %s421 = sand.u32 %s126, 1
          %s422 = smul.addr %s421, 8
          %s423 = scalar_lea.vmem [#allocation2], %s422
          %424 = dma.done %s420, 128
        $region48: #{tpu_custom_call.1} parent=43 // pred_fallthru
          _
      $region44: #{tpu_custom_call.1} parent=5 // pred_fallthru
        _
    $region6: #{tpu_custom_call.1} parent=1 // loop_footer
      %s17 = sadd.s32 1, %s13
    $region7: #{tpu_custom_call.1} parent=1 // loop_footer_branch
      %12 = sbr.rel target = $region3
    $region8: #{tpu_custom_call.1} parent=1 // loop_exit
      _
    %425 = vsyncpa [#allocation3], 1
    %s426 = scalar_lea.sflag [#allocation3], 1
    %427 = vsyncpa %s426, 1

</llo_original>
